<compile_context>
chip_gen: v5e
topology: v5e:2x2
jax: 0.10.0
libtpu: 0.0.40
codegen_flags: <defaults>
</compile_context>

<pallas_src>
import functools

import jax
import jax.numpy as jnp
from jax.experimental import pallas as pl
from jax.experimental.pallas import tpu as pltpu

# dropout probabilities (module references globals p1, p2)
P1 = 0.2
P2 = 0.5

_LANE = 128
_SUBLANE = 8
_TILE_CAP = 1024   # rows per batch tile (review: 512-1024 hits ~85% of roofline)


def _round_up(n, m):
    return (n + m - 1) // m * m


def _hash_bits_u32(seed_u32, shape, row_offset):
    """Counter-based uint32 hash (murmur3 fmix32 flavor), one 32-bit draw per
    element.  Depends only on (seed, global row, col) so masks are independent
    of the batch tiling.  The 32 bits are split 16/16 between the two dropout
    layers, so this is computed exactly once per tile."""
    rows = (jax.lax.broadcasted_iota(jnp.int32, shape, 0)
            + row_offset).astype(jnp.uint32)
    cols = jax.lax.broadcasted_iota(jnp.uint32, shape, 1)
    x = (rows * jnp.uint32(0x9E3779B1)) ^ (cols * jnp.uint32(0x85EBCA77))
    x = x + seed_u32
    x = x ^ (x >> 16)
    x = x * jnp.uint32(0x85EBCA6B)
    x = x ^ (x >> 13)
    x = x * jnp.uint32(0xC2B2AE35)
    x = x ^ (x >> 16)
    return x


def mlp_dropout_kernel(seed_ref, x_ref, w1_ref, b1_ref, w2_ref, b2_ref,
                       w3_ref, b3_ref, o_ref, *, train, p1, p2, tile_b):
    # Global row offset of this batch tile (grid-invariant dropout masks).
    row0 = pl.program_id(0) * tile_b

    h1_w = w1_ref.shape[1]
    h2_w = w2_ref.shape[1]

    # One shared 32-bit draw per element, only if any dropout is active.
    need_bits = train and ((0.0 < p1 < 1.0) or (0.0 < p2 < 1.0))
    if need_bits:
        bits = _hash_bits_u32(seed_ref[0].astype(jnp.uint32),
                              (tile_b, max(h1_w, h2_w)), row0)

    def _dropout(h, p, halfword):
        # p / train are Python values -> branches resolve at trace time,
        # matching the PyTorch `dropout` edge cases exactly.
        if (not train) or p == 0.0:
            return h
        if p == 1.0:
            return jnp.zeros_like(h)
        if halfword == 0:
            b16 = bits[:, :h.shape[1]] & jnp.uint32(0xFFFF)
        else:
            b16 = bits[:, :h.shape[1]] >> 16
        # keep iff b16 >= floor(p * 2^16)  ->  P(drop) == p to 2^-16 resolution.
        thresh = jnp.uint32(min(int(p * 65536.0), 65535))
        scale = jnp.float32(1.0 / (1.0 - p))
        return jnp.where(b16 >= thresh, h * scale, jnp.float32(0.0))

    # bf16 MXU matmuls with f32 accumulation; elementwise math in f32.
    h1 = jnp.dot(x_ref[...], w1_ref[...],
                 preferred_element_type=jnp.float32) + b1_ref[...]
    h1 = jnp.maximum(h1, 0.0)
    h1 = _dropout(h1, p1, halfword=0)

    h2 = jnp.dot(h1.astype(jnp.bfloat16), w2_ref[...],
                 preferred_element_type=jnp.float32) + b2_ref[...]
    h2 = jnp.maximum(h2, 0.0)
    h2 = _dropout(h2, p2, halfword=1)

    out = jnp.dot(h2.astype(jnp.bfloat16), w3_ref[...],
                  preferred_element_type=jnp.float32) + b3_ref[...]
    o_ref[...] = out.astype(o_ref.dtype)


def prepare_params(params):
    """One-time prep (NOT in the hot path): transpose PyTorch-shaped (out, in)
    weights to lane-dense (in, out), cast them to bf16 for the MXU, reshape
    biases to (1, out) f32, and zero-pad every feature dim to a multiple of
    128 lanes."""
    w1, b1, w2, b2, w3, b3 = params
    in_pad = _round_up(w1.shape[1], _LANE)
    h1_pad = _round_up(w1.shape[0], _LANE)
    h2_pad = _round_up(w2.shape[0], _LANE)
    out_pad = _round_up(w3.shape[0], _LANE)

    def pad2(a, r, c):
        return jnp.pad(a, ((0, r - a.shape[0]), (0, c - a.shape[1])))

    w1p = pad2(w1.T.astype(jnp.float32), in_pad, h1_pad).astype(jnp.bfloat16)
    b1p = pad2(b1.reshape(1, -1).astype(jnp.float32), 1, h1_pad)
    w2p = pad2(w2.T.astype(jnp.float32), h1_pad, h2_pad).astype(jnp.bfloat16)
    b2p = pad2(b2.reshape(1, -1).astype(jnp.float32), 1, h2_pad)
    w3p = pad2(w3.T.astype(jnp.float32), h2_pad, out_pad).astype(jnp.bfloat16)
    b3p = pad2(b3.reshape(1, -1).astype(jnp.float32), 1, out_pad)
    return (w1p, b1p, w2p, b2p, w3p, b3p)


@functools.partial(jax.jit,
                   static_argnames=("num_inputs", "num_outputs", "train"))
def net_forward(x, w1, b1, w2, b2, w3, b3, seed, *,
                num_inputs, num_outputs, train=True):
    """x: any shape whose trailing dims flatten to num_inputs (e.g. NCHW).
    w*/b* must come from prepare_params (lane-padded, (in, out), bf16 weights).
    NOTE: masks are a pure function of `seed`; vary `seed` across forward
    passes to get fresh dropout masks."""
    in_pad, h1_pad = w1.shape
    _, h2_pad = w2.shape
    _, out_pad = w3.shape

    x2 = x.reshape(-1, num_inputs)
    batch = x2.shape[0]

    # Batch tiling (static at trace time):
    #  * cap at _TILE_CAP rows (amortize ~0.35us per-grid-step overhead),
    #  * for mid-size batches keep >= 2 grid steps so ("parallel",) semantics
    #    can shard across both v7x TensorCores,
    #  * small batches stay in a single sublane-aligned tile.
    b_aligned = _round_up(batch, _SUBLANE)
    if b_aligned > _TILE_CAP:
        tile_b = _TILE_CAP
    elif b_aligned >= 2 * _LANE:
        tile_b = _round_up((b_aligned + 1) // 2, _SUBLANE)
    else:
        tile_b = b_aligned
    b_pad = _round_up(b_aligned, tile_b)

    x2 = jnp.pad(x2.astype(jnp.bfloat16),
                 ((0, b_pad - batch), (0, in_pad - num_inputs)))

    seed_arr = jnp.asarray(seed, dtype=jnp.int32).reshape(1)

    kernel = functools.partial(mlp_dropout_kernel,
                               train=train, p1=P1, p2=P2, tile_b=tile_b)

    grid = (b_pad // tile_b,)
    smem_spec = pl.BlockSpec(memory_space=pltpu.MemorySpace.SMEM)
    in_specs = [
        smem_spec,                                              # seed
        pl.BlockSpec((tile_b, in_pad), lambda i: (i, 0)),       # x tile (bf16)
        pl.BlockSpec((in_pad, h1_pad), lambda i: (0, 0)),       # w1 (resident)
        pl.BlockSpec((1, h1_pad), lambda i: (0, 0)),            # b1
        pl.BlockSpec((h1_pad, h2_pad), lambda i: (0, 0)),       # w2 (resident)
        pl.BlockSpec((1, h2_pad), lambda i: (0, 0)),            # b2
        pl.BlockSpec((h2_pad, out_pad), lambda i: (0, 0)),      # w3 (resident)
        pl.BlockSpec((1, out_pad), lambda i: (0, 0)),           # b3
    ]
    out_specs = pl.BlockSpec((tile_b, out_pad), lambda i: (i, 0))

    flops = 2 * b_pad * (in_pad * h1_pad + h1_pad * h2_pad + h2_pad * out_pad)
    bytes_accessed = (
        2 * (b_pad * in_pad                                  # bf16 x
             + in_pad * h1_pad + h1_pad * h2_pad + h2_pad * out_pad)  # bf16 w
        + 4 * (h1_pad + h2_pad + out_pad                     # f32 biases
               + b_pad * out_pad))                           # f32 output
    cost = pl.CostEstimate(flops=flops, transcendentals=0,
                           bytes_accessed=int(bytes_accessed))

    # Only attach TPU compiler params when actually compiling for TPU.
    compiler_params = None
    if jax.default_backend() == "tpu":
        compiler_params = pltpu.CompilerParams(
            dimension_semantics=("parallel",))

    out_padded = pl.pallas_call(
        kernel,
        out_shape=jax.ShapeDtypeStruct((b_pad, out_pad), jnp.float32),
        grid=grid,
        in_specs=in_specs,
        out_specs=out_specs,
        compiler_params=compiler_params,
        cost_estimate=cost,
    )(seed_arr, x2, w1, b1, w2, b2, w3, b3)

    return out_padded[:batch, :num_outputs]


def init_params(key, num_inputs, num_hiddens1, num_hiddens2, num_outputs):
    k1, k2, k3 = jax.random.split(key, 3)
    # Deterministic synthetic init (PyTorch-shaped: weight is (out, in)).
    w1 = jax.random.normal(k1, (num_hiddens1, num_inputs), jnp.float32) * 0.05
    b1 = jnp.zeros((num_hiddens1,), jnp.float32)
    w2 = jax.random.normal(k2, (num_hiddens2, num_hiddens1), jnp.float32) * 0.05
    b2 = jnp.zeros((num_hiddens2,), jnp.float32)
    w3 = jax.random.normal(k3, (num_outputs, num_hiddens2), jnp.float32) * 0.05
    b3 = jnp.zeros((num_outputs,), jnp.float32)
    return (w1, b1, w2, b2, w3, b3)


if __name__ == "__main__":
    # Small shapes consistent with the module: NCHW image input flattened
    # to num_inputs = C*H*W.
    batch, C, H, W = 8, 4, 8, 8
    num_inputs = C * H * W          # 256
    num_hiddens1 = 128
    num_hiddens2 = 64
    num_outputs = 16

    key = jax.random.PRNGKey(0)
    kx, kp, kb = jax.random.split(key, 3)
    x = jax.random.normal(kx, (batch, C, H, W), jnp.float32)
    raw_params = init_params(kp, num_inputs, num_hiddens1, num_hiddens2,
                             num_outputs)
    # One-time layout prep (transpose + bf16 cast + lane-pad), out of hot path.
    w1p, b1p, w2p, b2p, w3p, b3p = prepare_params(raw_params)

    # --- train mode (dropout active) ---
    out = net_forward(x, w1p, b1p, w2p, b2p, w3p, b3p, 42,
                      num_inputs=num_inputs, num_outputs=num_outputs,
                      train=True)
    out = jax.block_until_ready(out)
    assert out.shape == (batch, num_outputs)
    assert jnp.all(jnp.isfinite(out))

    # --- eval mode (no dropout) vs plain-JAX reference ---
    out_eval = jax.block_until_ready(
        net_forward(x, w1p, b1p, w2p, b2p, w3p, b3p, 42,
                    num_inputs=num_inputs, num_outputs=num_outputs,
                    train=False))
    assert out_eval.shape == (batch, num_outputs)

    w1, b1, w2, b2, w3, b3 = raw_params
    x2 = x.reshape(-1, num_inputs)
    # bf16-matmul reference (matches the kernel's precision choice).
    h1r = jnp.maximum(
        jnp.dot(x2.astype(jnp.bfloat16), w1.T.astype(jnp.bfloat16),
                preferred_element_type=jnp.float32) + b1, 0.0)
    h2r = jnp.maximum(
        jnp.dot(h1r.astype(jnp.bfloat16), w2.T.astype(jnp.bfloat16),
                preferred_element_type=jnp.float32) + b2, 0.0)
    ref_bf16 = jnp.dot(h2r.astype(jnp.bfloat16), w3.T.astype(jnp.bfloat16),
                       preferred_element_type=jnp.float32) + b3
    assert jnp.allclose(out_eval, ref_bf16, atol=2e-3, rtol=2e-3)
    # Loose sanity check against the full-f32 reference as well.
    h1f = jnp.maximum(x2 @ w1.T + b1, 0.0)
    h2f = jnp.maximum(h1f @ w2.T + b2, 0.0)
    ref_f32 = h2f @ w3.T + b3
    assert jnp.allclose(out_eval, ref_f32, atol=5e-2, rtol=5e-2)

    # --- larger batch: exercises the multi-step grid / parallel sharding ---
    x_big = jax.random.normal(kb, (2048, num_inputs), jnp.float32)
    out_big = jax.block_until_ready(
        net_forward(x_big, w1p, b1p, w2p, b2p, w3p, b3p, 7,
                    num_inputs=num_inputs, num_outputs=num_outputs,
                    train=True))
    assert out_big.shape == (2048, num_outputs)
    assert jnp.all(jnp.isfinite(out_big))

    print("KERNEL_OK")
</pallas_src>

<mosaic_0001>
module attributes {stable_mosaic.version = 11 : i64} {
  func.func @mlp_dropout_kernel(%arg0: i32, %arg1: memref<1xi32, #tpu.memory_space<smem>>, %arg2: memref<8x256xbf16, #tpu.memory_space<vmem>>, %arg3: memref<256x128xbf16, #tpu.memory_space<vmem>>, %arg4: memref<1x128xf32, #tpu.memory_space<vmem>>, %arg5: memref<128x128xbf16, #tpu.memory_space<vmem>>, %arg6: memref<1x128xf32, #tpu.memory_space<vmem>>, %arg7: memref<128x128xbf16, #tpu.memory_space<vmem>>, %arg8: memref<1x128xf32, #tpu.memory_space<vmem>>, %arg9: memref<8x128xf32, #tpu.memory_space<vmem>>) attributes {dimension_semantics = [#tpu.dimension_semantics<arbitrary>], iteration_bounds = array<i64: 1>, scalar_prefetch = 0 : i64, scratch_operands = 0 : i64, tpu.core_type = #tpu.core_type<tc>, window_params = [{transform_indices = @transform_0, window_bounds = array<i64: 1>}, {transform_indices = @transform_1, window_bounds = array<i64: 8, 256>}, {pipeline_mode = #tpu.pipeline_mode<synchronous>, transform_indices = @transform_2, window_bounds = array<i64: 256, 128>}, {pipeline_mode = #tpu.pipeline_mode<synchronous>, transform_indices = @transform_3, window_bounds = array<i64: 1, 128>}, {pipeline_mode = #tpu.pipeline_mode<synchronous>, transform_indices = @transform_4, window_bounds = array<i64: 128, 128>}, {pipeline_mode = #tpu.pipeline_mode<synchronous>, transform_indices = @transform_5, window_bounds = array<i64: 1, 128>}, {pipeline_mode = #tpu.pipeline_mode<synchronous>, transform_indices = @transform_6, window_bounds = array<i64: 128, 128>}, {pipeline_mode = #tpu.pipeline_mode<synchronous>, transform_indices = @transform_7, window_bounds = array<i64: 1, 128>}, {transform_indices = @transform_8, window_bounds = array<i64: 8, 128>}]} {
    %c8_i32 = arith.constant 8 : i32
    %0 = arith.muli %arg0, %c8_i32 : i32
    %c0 = arith.constant 0 : index
    %1 = memref.load %arg1[%c0] : memref<1xi32, #tpu.memory_space<smem>>
    %2 = tpu.iota {dimensions = array<i32: 0>} : vector<8x128xi32>
    %3 = vector.broadcast %0 : i32 to vector<8x128xi32>
    %4 = arith.addi %2, %3 : vector<8x128xi32>
    %5 = tpu.iota {dimensions = array<i32: 1>} : vector<8x128xi32>
    %c-1640531535_i32 = arith.constant -1640531535 : i32
    %6 = vector.broadcast %c-1640531535_i32 : i32 to vector<8x128xi32>
    %7 = arith.muli %4, %6 : vector<8x128xi32>
    %c-2048144777_i32 = arith.constant -2048144777 : i32
    %8 = vector.broadcast %c-2048144777_i32 : i32 to vector<8x128xi32>
    %9 = arith.muli %5, %8 : vector<8x128xi32>
    %10 = arith.xori %7, %9 : vector<8x128xi32>
    %11 = vector.broadcast %1 : i32 to vector<8x128xi32>
    %12 = arith.addi %10, %11 : vector<8x128xi32>
    %c16_i32 = arith.constant 16 : i32
    %13 = vector.broadcast %c16_i32 : i32 to vector<8x128xi32>
    %14 = arith.shrui %12, %13 : vector<8x128xi32>
    %15 = arith.xori %12, %14 : vector<8x128xi32>
    %c-2048144789_i32 = arith.constant -2048144789 : i32
    %16 = vector.broadcast %c-2048144789_i32 : i32 to vector<8x128xi32>
    %17 = arith.muli %15, %16 : vector<8x128xi32>
    %c13_i32 = arith.constant 13 : i32
    %18 = vector.broadcast %c13_i32 : i32 to vector<8x128xi32>
    %19 = arith.shrui %17, %18 : vector<8x128xi32>
    %20 = arith.xori %17, %19 : vector<8x128xi32>
    %c-1028477387_i32 = arith.constant -1028477387 : i32
    %21 = vector.broadcast %c-1028477387_i32 : i32 to vector<8x128xi32>
    %22 = arith.muli %20, %21 : vector<8x128xi32>
    %c16_i32_0 = arith.constant 16 : i32
    %23 = vector.broadcast %c16_i32_0 : i32 to vector<8x128xi32>
    %24 = arith.shrui %22, %23 : vector<8x128xi32>
    %25 = arith.xori %22, %24 : vector<8x128xi32>
    %c0_1 = arith.constant 0 : index
    %c0_2 = arith.constant 0 : index
    %26 = vector.load %arg2[%c0_1, %c0_2] : memref<8x256xbf16, #tpu.memory_space<vmem>>, vector<8x256xbf16>
    %c0_3 = arith.constant 0 : index
    %c0_4 = arith.constant 0 : index
    %27 = vector.load %arg3[%c0_3, %c0_4] : memref<256x128xbf16, #tpu.memory_space<vmem>>, vector<256x128xbf16>
    %cst = arith.constant dense<0.000000e+00> : vector<8x128xf32>
    %28 = tpu.matmul %26, %27, %cst {dimension_numbers = #tpu.dot_dimension_numbers<[1], [0], [0], [1], [0, 0, 1, 1], [], []>} : vector<8x256xbf16>, vector<256x128xbf16>, vector<8x128xf32> -> vector<8x128xf32>
    %c0_5 = arith.constant 0 : index
    %c0_6 = arith.constant 0 : index
    %29 = vector.load %arg4[%c0_5, %c0_6] : memref<1x128xf32, #tpu.memory_space<vmem>>, vector<1x128xf32>
    %30 = vector.broadcast %29 : vector<1x128xf32> to vector<8x128xf32>
    %31 = arith.addf %28, %30 : vector<8x128xf32>
    %cst_7 = arith.constant 0.000000e+00 : f32
    %32 = vector.broadcast %cst_7 : f32 to vector<8x128xf32>
    %33 = arith.maximumf %31, %32 : vector<8x128xf32>
    %c65535_i32 = arith.constant 65535 : i32
    %34 = vector.broadcast %c65535_i32 : i32 to vector<8x128xi32>
    %35 = arith.andi %25, %34 : vector<8x128xi32>
    %c13107_i32 = arith.constant 13107 : i32
    %36 = vector.broadcast %c13107_i32 : i32 to vector<8x128xi32>
    %37 = arith.cmpi uge, %35, %36 : vector<8x128xi32>
    %cst_8 = arith.constant 1.250000e+00 : f32
    %38 = vector.broadcast %cst_8 : f32 to vector<8x128xf32>
    %39 = arith.mulf %33, %38 : vector<8x128xf32>
    %cst_9 = arith.constant 0.000000e+00 : f32
    %40 = vector.broadcast %cst_9 : f32 to vector<8x128xf32>
    %41 = arith.select %37, %39, %40 : vector<8x128xi1>, vector<8x128xf32>
    %42 = arith.truncf %41 : vector<8x128xf32> to vector<8x128xbf16>
    %c0_10 = arith.constant 0 : index
    %c0_11 = arith.constant 0 : index
    %43 = vector.load %arg5[%c0_10, %c0_11] : memref<128x128xbf16, #tpu.memory_space<vmem>>, vector<128x128xbf16>
    %cst_12 = arith.constant dense<0.000000e+00> : vector<8x128xf32>
    %44 = tpu.matmul %42, %43, %cst_12 {dimension_numbers = #tpu.dot_dimension_numbers<[1], [0], [0], [1], [0, 0, 1, 1], [], []>} : vector<8x128xbf16>, vector<128x128xbf16>, vector<8x128xf32> -> vector<8x128xf32>
    %c0_13 = arith.constant 0 : index
    %c0_14 = arith.constant 0 : index
    %45 = vector.load %arg6[%c0_13, %c0_14] : memref<1x128xf32, #tpu.memory_space<vmem>>, vector<1x128xf32>
    %46 = vector.broadcast %45 : vector<1x128xf32> to vector<8x128xf32>
    %47 = arith.addf %44, %46 : vector<8x128xf32>
    %cst_15 = arith.constant 0.000000e+00 : f32
    %48 = vector.broadcast %cst_15 : f32 to vector<8x128xf32>
    %49 = arith.maximumf %47, %48 : vector<8x128xf32>
    %c16_i32_16 = arith.constant 16 : i32
    %50 = vector.broadcast %c16_i32_16 : i32 to vector<8x128xi32>
    %51 = arith.shrui %25, %50 : vector<8x128xi32>
    %c32768_i32 = arith.constant 32768 : i32
    %52 = vector.broadcast %c32768_i32 : i32 to vector<8x128xi32>
    %53 = arith.cmpi uge, %51, %52 : vector<8x128xi32>
    %cst_17 = arith.constant 2.000000e+00 : f32
    %54 = vector.broadcast %cst_17 : f32 to vector<8x128xf32>
    %55 = arith.mulf %49, %54 : vector<8x128xf32>
    %cst_18 = arith.constant 0.000000e+00 : f32
    %56 = vector.broadcast %cst_18 : f32 to vector<8x128xf32>
    %57 = arith.select %53, %55, %56 : vector<8x128xi1>, vector<8x128xf32>
    %58 = arith.truncf %57 : vector<8x128xf32> to vector<8x128xbf16>
    %c0_19 = arith.constant 0 : index
    %c0_20 = arith.constant 0 : index
    %59 = vector.load %arg7[%c0_19, %c0_20] : memref<128x128xbf16, #tpu.memory_space<vmem>>, vector<128x128xbf16>
    %cst_21 = arith.constant dense<0.000000e+00> : vector<8x128xf32>
    %60 = tpu.matmul %58, %59, %cst_21 {dimension_numbers = #tpu.dot_dimension_numbers<[1], [0], [0], [1], [0, 0, 1, 1], [], []>} : vector<8x128xbf16>, vector<128x128xbf16>, vector<8x128xf32> -> vector<8x128xf32>
    %c0_22 = arith.constant 0 : index
    %c0_23 = arith.constant 0 : index
    %61 = vector.load %arg8[%c0_22, %c0_23] : memref<1x128xf32, #tpu.memory_space<vmem>>, vector<1x128xf32>
    %62 = vector.broadcast %61 : vector<1x128xf32> to vector<8x128xf32>
    %63 = arith.addf %60, %62 : vector<8x128xf32>
    %c0_24 = arith.constant 0 : index
    %c0_25 = arith.constant 0 : index
    %64 = vector.load %arg9[%c0_24, %c0_25] : memref<8x128xf32, #tpu.memory_space<vmem>>, vector<8x128xf32>
    tpu.vector_store %arg9[%c0_24, %c0_25], %63 {strides = array<i32>} : memref<8x128xf32, #tpu.memory_space<vmem>>, vector<8x128xf32>,
    return
  }
  func.func @transform_0(%arg0: i32) -> i32 {
    %c0_i32 = arith.constant 0 : i32
    %c0_i32_0 = arith.constant 0 : i32
    return %c0_i32 : i32
  }
  func.func @transform_1(%arg0: i32) -> (i32, i32) {
    %c0_i32 = arith.constant 0 : i32
    %c0_i32_0 = arith.constant 0 : i32
    return %arg0, %c0_i32 : i32, i32
  }
  func.func @transform_2(%arg0: i32) -> (i32, i32) {
    %c0_i32 = arith.constant 0 : i32
    %c0_i32_0 = arith.constant 0 : i32
    %c0_i32_1 = arith.constant 0 : i32
    return %c0_i32, %c0_i32_0 : i32, i32
  }
  func.func @transform_3(%arg0: i32) -> (i32, i32) {
    %c0_i32 = arith.constant 0 : i32
    %c0_i32_0 = arith.constant 0 : i32
    %c0_i32_1 = arith.constant 0 : i32
    return %c0_i32, %c0_i32_0 : i32, i32
  }
  func.func @transform_4(%arg0: i32) -> (i32, i32) {
    %c0_i32 = arith.constant 0 : i32
    %c0_i32_0 = arith.constant 0 : i32
    %c0_i32_1 = arith.constant 0 : i32
    return %c0_i32, %c0_i32_0 : i32, i32
  }
  func.func @transform_5(%arg0: i32) -> (i32, i32) {
    %c0_i32 = arith.constant 0 : i32
    %c0_i32_0 = arith.constant 0 : i32
    %c0_i32_1 = arith.constant 0 : i32
    return %c0_i32, %c0_i32_0 : i32, i32
  }
  func.func @transform_6(%arg0: i32) -> (i32, i32) {
    %c0_i32 = arith.constant 0 : i32
    %c0_i32_0 = arith.constant 0 : i32
    %c0_i32_1 = arith.constant 0 : i32
    return %c0_i32, %c0_i32_0 : i32, i32
  }
  func.func @transform_7(%arg0: i32) -> (i32, i32) {
    %c0_i32 = arith.constant 0 : i32
    %c0_i32_0 = arith.constant 0 : i32
    %c0_i32_1 = arith.constant 0 : i32
    return %c0_i32, %c0_i32_0 : i32, i32
  }
  func.func @transform_8(%arg0: i32) -> (i32, i32) {
    %c0_i32 = arith.constant 0 : i32
    %c0_i32_0 = arith.constant 0 : i32
    return %arg0, %c0_i32 : i32, i32
  }
}

</mosaic_0001>

<llo_original>
// kernel: net_forward.1
$region0: #{net_forward.1}
  #allocation0 [shape = 'u32[]', space=smem, size = 0x4, offset = 0x4, fixed_abs, tag = 'smem constant byte address 0x4 - core index']
  #allocation1 [shape = 'u32[72,128]{1,0:T(1,128)}', space=vmem, size = 0x9000, scoped, tag = 'internal scratch']
  #allocation2 [shape = 's32[1]{0:T(128)S(6)}', space=smem, size = 0x200, scoped, tag = 'scoped memory for net_forward.1']
  %s0 = inlined_call_operand.<no memory space> [shape: s32[1], index: 0, kind: input, shape index: {}]
  %s1 = inlined_call_operand.vmem [shape: bf16[8,256], index: 1, kind: input, shape index: {}]
  %s2 = inlined_call_operand.vmem [shape: bf16[256,128], index: 2, kind: input, shape index: {}]
  %s3 = inlined_call_operand.vmem [shape: f32[1,128], index: 3, kind: input, shape index: {}]
  %s4 = inlined_call_operand.vmem [shape: bf16[128,128], index: 4, kind: input, shape index: {}]
  %s5 = inlined_call_operand.vmem [shape: f32[1,128], index: 5, kind: input, shape index: {}]
  %s6 = inlined_call_operand.vmem [shape: bf16[128,128], index: 6, kind: input, shape index: {}]
  %s7 = inlined_call_operand.vmem [shape: f32[1,128], index: 7, kind: input, shape index: {}]
  %s8 = inlined_call_operand.hbm [shape: f32[8,128], index: 8, kind: output, shape index: {}]
  %s9 = sld [smem:[#allocation0]]
  $region42: #{net_forward.1} parent=0
    _
  %s11 = ssub.s32 1, %s9
  %s12 = scalar_select 0, %s11, %s9
  %13 = sst [smem:[#allocation2]] %s0
  $region1: #{net_forward.1} parent=0
    #allocation3 [shape = 'u8[4096]{0}', space=vmem, size = 0x1000, scoped, tag = 'output window, operand 0, single buffered']
    #allocation4 [shape = 's32[1]{0}', space=sflag, size = 0x4, scoped, tag = 'scoped memory for net_forward.1']
    %14 = vsyncpa [#allocation4], 0
    // Predicated region
    $region2: #{net_forward.1} parent=1 // pred_check
      _
    $region3: #{net_forward.1} parent=1 // pred_check_branch
      %16 = sbr.rel (0) target = $region5
    $region4: #{net_forward.1} parent=1 // pred_region
      _
    $region5: #{net_forward.1} parent=1 // pred_fallthru
      _
    // Predicated region
    $region6: #{net_forward.1} parent=1 // pred_check
      _
    $region7: #{net_forward.1} parent=1 // pred_check_branch
      %18 = sbr.rel (0) target = $region9
    $region8: #{net_forward.1} parent=1 // pred_region
      _
    $region9: #{net_forward.1} parent=1 // pred_fallthru
      _
    // Predicated region
    $region10: #{net_forward.1} parent=1 // pred_check
      _
    $region11: #{net_forward.1} parent=1 // pred_check_branch
      %20 = sbr.rel (0) target = $region13
    $region12: #{net_forward.1} parent=1 // pred_region
      _
    $region13: #{net_forward.1} parent=1 // pred_fallthru
      _
    // Predicated region
    $region14: #{net_forward.1} parent=1 // pred_check
      _
    $region15: #{net_forward.1} parent=1 // pred_check_branch
      %22 = sbr.rel (0) target = $region17
    $region16: #{net_forward.1} parent=1 // pred_region
      _
    $region17: #{net_forward.1} parent=1 // pred_fallthru
      _
    // Predicated region
    $region18: #{net_forward.1} parent=1 // pred_check
      _
    $region19: #{net_forward.1} parent=1 // pred_check_branch
      %24 = sbr.rel (0) target = $region21
    $region20: #{net_forward.1} parent=1 // pred_region
      _
    $region21: #{net_forward.1} parent=1 // pred_fallthru
      _
    // Predicated region
    $region22: #{net_forward.1} parent=1 // pred_check
      _
    $region23: #{net_forward.1} parent=1 // pred_check_branch
      %26 = sbr.rel (0) target = $region25
    $region24: #{net_forward.1} parent=1 // pred_region
      _
    $region25: #{net_forward.1} parent=1 // pred_fallthru
      _
    // Predicated region
    $region26: #{net_forward.1} parent=1 // pred_check
      _
    $region27: #{net_forward.1} parent=1 // pred_check_branch
      %28 = sbr.rel (0) target = $region29
    $region28: #{net_forward.1} parent=1 // pred_region
      _
    $region29: #{net_forward.1} parent=1 // pred_fallthru
      _
    // Predicated region
    $region30: #{net_forward.1} parent=1 // pred_check
      _
    $region31: #{net_forward.1} parent=1 // pred_check_branch
      %30 = sbr.rel (0) target = $region33
    $region32: #{net_forward.1} parent=1 // pred_region
      _
    $region33: #{net_forward.1} parent=1 // pred_fallthru
      _
    %s31 = smul.u32 0, 8
    %s32 = sld [smem:[#allocation2]]
    %v33 = vlaneseq
    %v34 = vshrl.u32 %v33, 7
    %v35 = vstv %s31
    %v36 = vadd.s32 %v34, %v35
    %v37 = vlaneseq
    %v38 = vand.u32 %v37, 127
    %v39 = vmul.u32 %v36, 2654435761
    %v40 = vmul.u32 %v38, 2246822519
    %v41 = vxor.u32 %v39, %v40
    %v42 = vstv %s32
    %v43 = vadd.s32 %v41, %v42
    %v44 = vshrl.u32 %v43, 16
    %v45 = vxor.u32 %v43, %v44
    %v46 = vmul.u32 %v45, 2246822507
    %v47 = vshrl.u32 %v46, 13
    %v48 = vxor.u32 %v46, %v47
    %v49 = vmul.u32 %v48, 3266489909
    %v50 = vshrl.u32 %v49, 16
    %v51 = vxor.u32 %v49, %v50
    %v52 = vld [vmem:[%s1] sm:$0xff]
    %v53 = vld [vmem:[%s2] sm:$0xf]
    %v54 = vld [vmem:[%s2 + $0x4] sm:$0xf]
    %v55 = vld [vmem:[%s2 + $0x8] sm:$0xf]
    %v56 = vld [vmem:[%s2 + $0xc] sm:$0xf]
    %v57 = vld [vmem:[%s2 + $0x10] sm:$0xf]
    %v58 = vld [vmem:[%s2 + $0x14] sm:$0xf]
    %v59 = vld [vmem:[%s2 + $0x18] sm:$0xf]
    %v60 = vld [vmem:[%s2 + $0x1c] sm:$0xf]
    %v61 = vld [vmem:[%s2 + $0x20] sm:$0xf]
    %v62 = vld [vmem:[%s2 + $0x24] sm:$0xf]
    %v63 = vld [vmem:[%s2 + $0x28] sm:$0xf]
    %v64 = vld [vmem:[%s2 + $0x2c] sm:$0xf]
    %v65 = vld [vmem:[%s2 + $0x30] sm:$0xf]
    %v66 = vld [vmem:[%s2 + $0x34] sm:$0xf]
    %v67 = vld [vmem:[%s2 + $0x38] sm:$0xf]
    %v68 = vld [vmem:[%s2 + $0x3c] sm:$0xf]
    %v69 = vld [vmem:[%s2 + $0x40] sm:$0xf]
    %v70 = vld [vmem:[%s2 + $0x44] sm:$0xf]
    %v71 = vld [vmem:[%s2 + $0x48] sm:$0xf]
    %v72 = vld [vmem:[%s2 + $0x4c] sm:$0xf]
    %v73 = vld [vmem:[%s2 + $0x50] sm:$0xf]
    %v74 = vld [vmem:[%s2 + $0x54] sm:$0xf]
    %v75 = vld [vmem:[%s2 + $0x58] sm:$0xf]
    %v76 = vld [vmem:[%s2 + $0x5c] sm:$0xf]
    %v77 = vld [vmem:[%s2 + $0x60] sm:$0xf]
    %v78 = vld [vmem:[%s2 + $0x64] sm:$0xf]
    %v79 = vld [vmem:[%s2 + $0x68] sm:$0xf]
    %v80 = vld [vmem:[%s2 + $0x6c] sm:$0xf]
    %v81 = vld [vmem:[%s2 + $0x70] sm:$0xf]
    %v82 = vld [vmem:[%s2 + $0x74] sm:$0xf]
    %v83 = vld [vmem:[%s2 + $0x78] sm:$0xf]
    %v84 = vld [vmem:[%s2 + $0x7c] sm:$0xf]
    %v85 = vld [vmem:[%s3] sm:$0x1]
    %v87 = vperm.slane %v85, 0
    %v90 = vunpack.c.l.b16 %v52
    %v91 = vunpack.c.h.b16 %v52
    %v92 = vpack.c.b16 %v90, %v90
    %v93 = vpack.c.b16 %v91, %v91
    %v128 = vunpack.c.l.b16 %v53
    %v129 = vunpack.c.l.b16 %v54
    %v130 = vunpack.c.l.b16 %v55
    %v131 = vunpack.c.l.b16 %v56
    %v132 = vunpack.c.l.b16 %v57
    %v133 = vunpack.c.l.b16 %v58
    %v134 = vunpack.c.l.b16 %v59
    %v135 = vunpack.c.l.b16 %v60
    %v136 = vunpack.c.l.b16 %v61
    %v137 = vunpack.c.l.b16 %v62
    %v138 = vunpack.c.l.b16 %v63
    %v139 = vunpack.c.l.b16 %v64
    %v140 = vunpack.c.l.b16 %v65
    %v141 = vunpack.c.l.b16 %v66
    %v142 = vunpack.c.l.b16 %v67
    %v143 = vunpack.c.l.b16 %v68
    %v144 = vunpack.c.l.b16 %v69
    %v145 = vunpack.c.l.b16 %v70
    %v146 = vunpack.c.l.b16 %v71
    %v147 = vunpack.c.l.b16 %v72
    %v148 = vunpack.c.l.b16 %v73
    %v149 = vunpack.c.l.b16 %v74
    %v150 = vunpack.c.l.b16 %v75
    %v151 = vunpack.c.l.b16 %v76
    %v152 = vunpack.c.l.b16 %v77
    %v153 = vunpack.c.l.b16 %v78
    %v154 = vunpack.c.l.b16 %v79
    %v155 = vunpack.c.l.b16 %v80
    %v156 = vunpack.c.l.b16 %v81
    %v157 = vunpack.c.l.b16 %v82
    %v158 = vunpack.c.l.b16 %v83
    %v159 = vunpack.c.l.b16 %v84
    %v160 = vpack.c.b16 %v129, %v128
    %v161 = vpack.c.b16 %v131, %v130
    %v162 = vpack.c.b16 %v133, %v132
    %v163 = vpack.c.b16 %v135, %v134
    %v164 = vpack.c.b16 %v137, %v136
    %v165 = vpack.c.b16 %v139, %v138
    %v166 = vpack.c.b16 %v141, %v140
    %v167 = vpack.c.b16 %v143, %v142
    %v168 = vpack.c.b16 %v145, %v144
    %v169 = vpack.c.b16 %v147, %v146
    %v170 = vpack.c.b16 %v149, %v148
    %v171 = vpack.c.b16 %v151, %v150
    %v172 = vpack.c.b16 %v153, %v152
    %v173 = vpack.c.b16 %v155, %v154
    %v174 = vpack.c.b16 %v157, %v156
    %v175 = vpack.c.b16 %v159, %v158
    %192 = vmatpush.bf16.msra.mxu0 %v167
    %193 = vmatpush.bf16.msra.mxu0 %v166
    %194 = vmatpush.bf16.msra.mxu0 %v165
    %195 = vmatpush.bf16.msra.mxu0 %v164
    %196 = vmatpush.bf16.msra.mxu0 %v163
    %197 = vmatpush.bf16.msra.mxu0 %v162
    %198 = vmatpush.bf16.msra.mxu0 %v161
    %199 = vmatpush.bf16.msra.mxu0 %v160
    %200 = vmatmul.bf16.gmra.mxu0 %v92
    %v201 = vpop.f32.mrf.mxu0
    %v202 = vadd.f32 %v87, %v201
    %v203 = vpop.f32.mrf.mxu0
    %204 = vdwg.mxu0
    %205 = vmatpush.bf16.msra.mxu0 %v175
    %206 = vmatpush.bf16.msra.mxu0 %v174
    %207 = vmatpush.bf16.msra.mxu0 %v173
    %208 = vmatpush.bf16.msra.mxu0 %v172
    %209 = vmatpush.bf16.msra.mxu0 %v171
    %210 = vmatpush.bf16.msra.mxu0 %v170
    %211 = vmatpush.bf16.msra.mxu0 %v169
    %212 = vmatpush.bf16.msra.mxu0 %v168
    %213 = vmatmul.bf16.gmra.mxu0 %v93
    %v214 = vpop.f32.mrf.mxu0
    %v215 = vadd.f32 %v202, %v214
    %v216 = vpop.f32.mrf.mxu0
    %217 = vdwg.mxu0
    %v218 = vmax.f32 %v215, 0.0
    %v219 = vand.u32 %v51, 65535
    %v220 = vadd.s32 %v219, 2147483648
    %vm222 = vcmp.ge.s32.totalorder %v220, 2147496755
    %v223 = vmul.f32 %v218, 1.25
    %v224 = vsel %vm222, %v223, 0.0
    %v225 = vpack.c.bf16 %v224, %v224
    %v226 = vld [vmem:[%s4] sm:$0xf]
    %v227 = vld [vmem:[%s4 + $0x4] sm:$0xf]
    %v228 = vld [vmem:[%s4 + $0x8] sm:$0xf]
    %v229 = vld [vmem:[%s4 + $0xc] sm:$0xf]
    %v230 = vld [vmem:[%s4 + $0x10] sm:$0xf]
    %v231 = vld [vmem:[%s4 + $0x14] sm:$0xf]
    %v232 = vld [vmem:[%s4 + $0x18] sm:$0xf]
    %v233 = vld [vmem:[%s4 + $0x1c] sm:$0xf]
    %v234 = vld [vmem:[%s4 + $0x20] sm:$0xf]
    %v235 = vld [vmem:[%s4 + $0x24] sm:$0xf]
    %v236 = vld [vmem:[%s4 + $0x28] sm:$0xf]
    %v237 = vld [vmem:[%s4 + $0x2c] sm:$0xf]
    %v238 = vld [vmem:[%s4 + $0x30] sm:$0xf]
    %v239 = vld [vmem:[%s4 + $0x34] sm:$0xf]
    %v240 = vld [vmem:[%s4 + $0x38] sm:$0xf]
    %v241 = vld [vmem:[%s4 + $0x3c] sm:$0xf]
    %v242 = vld [vmem:[%s5] sm:$0x1]
    %v244 = vperm.slane %v242, 0
    %v262 = vunpack.c.l.b16 %v226
    %v263 = vunpack.c.l.b16 %v227
    %v264 = vunpack.c.l.b16 %v228
    %v265 = vunpack.c.l.b16 %v229
    %v266 = vunpack.c.l.b16 %v230
    %v267 = vunpack.c.l.b16 %v231
    %v268 = vunpack.c.l.b16 %v232
    %v269 = vunpack.c.l.b16 %v233
    %v270 = vunpack.c.l.b16 %v234
    %v271 = vunpack.c.l.b16 %v235
    %v272 = vunpack.c.l.b16 %v236
    %v273 = vunpack.c.l.b16 %v237
    %v274 = vunpack.c.l.b16 %v238
    %v275 = vunpack.c.l.b16 %v239
    %v276 = vunpack.c.l.b16 %v240
    %v277 = vunpack.c.l.b16 %v241
    %v278 = vpack.c.b16 %v263, %v262
    %v279 = vpack.c.b16 %v265, %v264
    %v280 = vpack.c.b16 %v267, %v266
    %v281 = vpack.c.b16 %v269, %v268
    %v282 = vpack.c.b16 %v271, %v270
    %v283 = vpack.c.b16 %v273, %v272
    %v284 = vpack.c.b16 %v275, %v274
    %v285 = vpack.c.b16 %v277, %v276
    %294 = vmatpush.bf16.msra.mxu0 %v285
    %295 = vmatpush.bf16.msra.mxu0 %v284
    %296 = vmatpush.bf16.msra.mxu0 %v283
    %297 = vmatpush.bf16.msra.mxu0 %v282
    %298 = vmatpush.bf16.msra.mxu0 %v281
    %299 = vmatpush.bf16.msra.mxu0 %v280
    %300 = vmatpush.bf16.msra.mxu0 %v279
    %301 = vmatpush.bf16.msra.mxu0 %v278
    %302 = vmatmul.bf16.gmra.mxu0 %v225
    %v303 = vpop.f32.mrf.mxu0
    %v304 = vadd.f32 %v244, %v303
    %v305 = vpop.f32.mrf.mxu0
    %306 = vdwg.mxu0
    %v307 = vmax.f32 %v304, 0.0
    %v308 = vshrl.u32 %v51, 16
    %v309 = vadd.s32 %v308, 2147483648
    %vm311 = vcmp.ge.s32.totalorder %v309, 2147516416
    %v312 = vmul.f32 %v307, 2.0
    %v313 = vsel %vm311, %v312, 0.0
    %v314 = vpack.c.bf16 %v313, %v313
    %v315 = vld [vmem:[%s6] sm:$0xf]
    %v316 = vld [vmem:[%s6 + $0x4] sm:$0xf]
    %v317 = vld [vmem:[%s6 + $0x8] sm:$0xf]
    %v318 = vld [vmem:[%s6 + $0xc] sm:$0xf]
    %v319 = vld [vmem:[%s6 + $0x10] sm:$0xf]
    %v320 = vld [vmem:[%s6 + $0x14] sm:$0xf]
    %v321 = vld [vmem:[%s6 + $0x18] sm:$0xf]
    %v322 = vld [vmem:[%s6 + $0x1c] sm:$0xf]
    %v323 = vld [vmem:[%s6 + $0x20] sm:$0xf]
    %v324 = vld [vmem:[%s6 + $0x24] sm:$0xf]
    %v325 = vld [vmem:[%s6 + $0x28] sm:$0xf]
    %v326 = vld [vmem:[%s6 + $0x2c] sm:$0xf]
    %v327 = vld [vmem:[%s6 + $0x30] sm:$0xf]
    %v328 = vld [vmem:[%s6 + $0x34] sm:$0xf]
    %v329 = vld [vmem:[%s6 + $0x38] sm:$0xf]
    %v330 = vld [vmem:[%s6 + $0x3c] sm:$0xf]
    %v331 = vld [vmem:[%s7] sm:$0x1]
    %v333 = vperm.slane %v331, 0
    %v351 = vunpack.c.l.b16 %v315
    %v352 = vunpack.c.l.b16 %v316
    %v353 = vunpack.c.l.b16 %v317
    %v354 = vunpack.c.l.b16 %v318
    %v355 = vunpack.c.l.b16 %v319
    %v356 = vunpack.c.l.b16 %v320
    %v357 = vunpack.c.l.b16 %v321
    %v358 = vunpack.c.l.b16 %v322
    %v359 = vunpack.c.l.b16 %v323
    %v360 = vunpack.c.l.b16 %v324
    %v361 = vunpack.c.l.b16 %v325
    %v362 = vunpack.c.l.b16 %v326
    %v363 = vunpack.c.l.b16 %v327
    %v364 = vunpack.c.l.b16 %v328
    %v365 = vunpack.c.l.b16 %v329
    %v366 = vunpack.c.l.b16 %v330
    %v367 = vpack.c.b16 %v352, %v351
    %v368 = vpack.c.b16 %v354, %v353
    %v369 = vpack.c.b16 %v356, %v355
    %v370 = vpack.c.b16 %v358, %v357
    %v371 = vpack.c.b16 %v360, %v359
    %v372 = vpack.c.b16 %v362, %v361
    %v373 = vpack.c.b16 %v364, %v363
    %v374 = vpack.c.b16 %v366, %v365
    %383 = vmatpush.bf16.msra.mxu0 %v374
    %384 = vmatpush.bf16.msra.mxu0 %v373
    %385 = vmatpush.bf16.msra.mxu0 %v372
    %386 = vmatpush.bf16.msra.mxu0 %v371
    %387 = vmatpush.bf16.msra.mxu0 %v370
    %388 = vmatpush.bf16.msra.mxu0 %v369
    %389 = vmatpush.bf16.msra.mxu0 %v368
    %390 = vmatpush.bf16.msra.mxu0 %v367
    %391 = vmatmul.bf16.gmra.mxu0 %v314
    %v392 = vpop.f32.mrf.mxu0
    %v393 = vadd.f32 %v333, %v392
    %v394 = vpop.f32.mrf.mxu0
    %395 = vdwg.mxu0
    %396 = vst [vmem:[#allocation3] sm:$0xff] %v393
    // Predicated region
    $region34: #{net_forward.1} parent=1 // pred_check
      _
    $region35: #{net_forward.1} parent=1 // pred_check_branch
      %398 = sbr.rel (0) target = $region37
    $region36: #{net_forward.1} parent=1 // pred_region
      %400 = vsyncadd [#allocation4], 0
      %s402 = sshll.u32 [#allocation3], 4
      %s403 = int_to_ptr.vmem [resolvable:$true] %s402
      %s404 = sshll.u32 %s8, 4
      %s405 = int_to_ptr.hbm [resolvable:$true] %s404
      %407 = dma.vmem_to_hbm [thread:$0]  %s403, 128, %s405, [#allocation4]
    $region37: #{net_forward.1} parent=1 // pred_fallthru
      _
    // Predicated region
    $region38: #{net_forward.1} parent=1 // pred_check
      _
    $region39: #{net_forward.1} parent=1 // pred_check_branch
      %409 = sbr.rel (0) target = $region41
    $region40: #{net_forward.1} parent=1 // pred_region
      %411 = dma.done [#allocation4], 128
    $region41: #{net_forward.1} parent=1 // pred_fallthru
      _
    %412 = vsyncpa [#allocation4], 1

</llo_original>
